<compile_context>
chip_gen: v5e
topology: v5e:2x2
jax: 0.10.0
libtpu: 0.0.40
codegen_flags: <defaults>
</compile_context>

<pallas_src>
import functools

import jax
import jax.numpy as jnp
from jax.experimental import pallas as pl
from jax.experimental.pallas import tpu as pltpu

_SUBLANE = 8


def _default_vmem_budget():
    # ~3/4 of physical VMEM: ~96 MiB on v5e/v6e (128 MiB), ~48 MiB on v7x (64 MiB/TC).
    try:
        return (int(pltpu.get_tpu_info().vmem_capacity_bytes) * 3) // 4
    except Exception:
        return 48 * 1024 * 1024      # conservative, safe on every generation


_VMEM_BUDGET = _default_vmem_budget()


def _round_up(x, m):
    return (x + m - 1) // m * m


def _mlp_kernel(x_ref, w1_ref, b_ref, w2_ref, w3_ref, o_ref):
    """Fused 3-layer MLP on one (tm, input_dim) row tile of x.

    The x tile is cast to the weight dtype in-kernel (hidden under the MXU);
    every matmul accumulates in f32; bias adds + ReLU stay in the f32
    accumulator; only the final store casts to the output dtype.
    """
    x = x_ref[...].astype(w1_ref.dtype)
    h = jnp.dot(x, w1_ref[...], preferred_element_type=jnp.float32) + b_ref[0:1, :]
    h = jnp.maximum(h, 0.0)
    h = jnp.dot(h.astype(w2_ref.dtype), w2_ref[...],
                preferred_element_type=jnp.float32) + b_ref[1:2, :]
    h = jnp.maximum(h, 0.0)
    y = jnp.dot(h.astype(w3_ref.dtype), w3_ref[...],
                preferred_element_type=jnp.float32) + b_ref[2:3, :]
    o_ref[...] = y.astype(o_ref.dtype)


def _pick_tm(tm, m_rows, per_row_bytes, weight_bytes):
    """Row-tile size: fit double-buffered x/out tiles + f32 intermediates next
    to the (conservatively double-buffered) VMEM-resident weights, keep tm a
    sublane multiple, and prefer >= ~4 row blocks so v7x can shard the
    'parallel' row axis across its two TensorCores."""
    avail = max(_VMEM_BUDGET - 2 * weight_bytes, per_row_bytes * _SUBLANE)
    cap = max(_SUBLANE, (avail // per_row_bytes) // _SUBLANE * _SUBLANE)
    tm_eff = min(tm, cap)
    if m_rows > _SUBLANE:
        tm_eff = min(tm_eff, _round_up(pl.cdiv(m_rows, 4), _SUBLANE))
    return max(_SUBLANE, min(tm_eff, _round_up(m_rows, _SUBLANE)))


def cast_params(params, dtype):
    """Pre-cast the weights once (outside the per-call jit) for the bf16 path."""
    out = dict(params)
    for k in ("w1", "w2", "w3"):
        out[k] = params[k].astype(dtype)
    return out


@functools.partial(jax.jit, static_argnames=("tm", "compute_dtype"))
def audio_video_feature_extractor(x, params, *, tm=512, compute_dtype=None):
    """x: (batch, seq, input_dim). params: w{1,2,3} as (in, out), b{1,2,3} as (out,).

    compute_dtype=jnp.bfloat16 is the intended production path on v5e/v6e/v7x
    (halves weight DMA / VMEM, ~2x MXU rate) while keeping f32 accumulation and
    f32 bias/ReLU inside the kernel; pre-cast the weights with cast_params() so
    the per-call cast is a no-op.  compute_dtype=None keeps the weight dtype
    (bit-exact vs. the f32 reference when everything is f32).
    """
    w1, b1, w2, b2, w3, b3 = (params["w1"], params["b1"], params["w2"],
                              params["b2"], params["w3"], params["b3"])
    batch, seq, input_dim = x.shape
    hidden = w1.shape[1]
    out_dtype = x.dtype
    cdt = jnp.dtype(w1.dtype if compute_dtype is None else compute_dtype)

    # Weights in compute dtype (no-op if pre-cast); biases folded into a single
    # f32 (3, hidden) array -> one tiny resident block instead of 3 DMAs/step.
    w1c, w2c, w3c = w1.astype(cdt), w2.astype(cdt), w3.astype(cdt)
    b = jnp.stack([b1, b2, b3]).astype(jnp.float32)

    m = batch * seq
    x2d = x.reshape(m, input_dim)            # contiguous view: no pad/cast/copy

    c_isz = cdt.itemsize
    x_isz = jnp.dtype(x.dtype).itemsize
    o_isz = jnp.dtype(out_dtype).itemsize
    weight_bytes = (input_dim * hidden + 2 * hidden * hidden) * c_isz + 3 * hidden * 4
    per_row = (2 * (input_dim * x_isz + hidden * o_isz)      # x / out tiles (2 bufs each)
               + input_dim * c_isz + 3 * hidden * 4)          # in-kernel cast + f32 h1/h2/y

    if 2 * weight_bytes + _SUBLANE * per_row > _VMEM_BUDGET:
        # TODO(synk): stream w2/w3 over a second ("arbitrary") grid axis of
        # hidden chunks with a VMEM f32 accumulator instead of this XLA fallback.
        h = jnp.maximum(jnp.dot(x2d.astype(cdt), w1c,
                                preferred_element_type=jnp.float32) + b1, 0.0)
        h = jnp.maximum(jnp.dot(h.astype(cdt), w2c,
                                preferred_element_type=jnp.float32) + b2, 0.0)
        y = jnp.dot(h.astype(cdt), w3c, preferred_element_type=jnp.float32) + b3
        return y.astype(out_dtype).reshape(batch, seq, hidden)

    tm_eff = _pick_tm(tm, m, per_row, weight_bytes)
    grid = (pl.cdiv(m, tm_eff),)
    const = lambda i: (0, 0)                 # weights / biases: same block every step

    flops = 2 * m * (input_dim * hidden + 2 * hidden * hidden)
    bytes_accessed = m * input_dim * x_isz + weight_bytes + m * hidden * o_isz

    out2d = pl.pallas_call(
        _mlp_kernel,
        out_shape=jax.ShapeDtypeStruct((m, hidden), out_dtype),
        grid_spec=pltpu.PrefetchScalarGridSpec(
            num_scalar_prefetch=0,
            grid=grid,
            in_specs=[
                pl.BlockSpec((tm_eff, input_dim), lambda i: (i, 0)),  # x row tile
                pl.BlockSpec((input_dim, hidden), const),             # w1 (VMEM-resident)
                pl.BlockSpec((3, hidden), const),                     # b1|b2|b3 (f32)
                pl.BlockSpec((hidden, hidden), const),                # w2 (VMEM-resident)
                pl.BlockSpec((hidden, hidden), const),                # w3 (VMEM-resident)
            ],
            out_specs=pl.BlockSpec((tm_eff, hidden), lambda i: (i, 0)),
        ),
        compiler_params=pltpu.CompilerParams(
            dimension_semantics=("parallel",),   # row tiles shard across TCs (v7x)
            vmem_limit_bytes=_VMEM_BUDGET,
        ),
        cost_estimate=pl.CostEstimate(
            flops=flops, transcendentals=0, bytes_accessed=bytes_accessed),
    )(x2d, w1c, b, w2c, w3c)

    return out2d.reshape(batch, seq, hidden)


def init_params(key, input_dim, hidden_dim, dtype=jnp.float32):
    """Deterministic synthetic init (uniform, torch-Linear-like scale).

    Weights are stored as (in_features, out_features), i.e. transposed relative
    to torch's (out, in), so the kernel computes x @ W + b.
    """
    ks = jax.random.split(key, 6)

    def lin(kw, kb, fan_in, fan_out):
        bound = 1.0 / jnp.sqrt(fan_in)
        w = jax.random.uniform(kw, (fan_in, fan_out), dtype, -bound, bound)
        bb = jax.random.uniform(kb, (fan_out,), dtype, -bound, bound)
        return w, bb

    w1, b1 = lin(ks[0], ks[1], input_dim, hidden_dim)
    w2, b2 = lin(ks[2], ks[3], hidden_dim, hidden_dim)
    w3, b3 = lin(ks[4], ks[5], hidden_dim, hidden_dim)
    return {"w1": w1, "b1": b1, "w2": w2, "b2": b2, "w3": w3, "b3": b3}


def reference_forward(x, params):
    """Pure-JAX reference matching the PyTorch forward semantics."""
    h = jnp.maximum(x @ params["w1"] + params["b1"], 0.0)
    h = jnp.maximum(h @ params["w2"] + params["b2"], 0.0)
    return h @ params["w3"] + params["b3"]


if __name__ == "__main__":
    batch, seq, input_dim, hidden_dim = 2, 8, 32, 32

    key = jax.random.PRNGKey(0)
    k_x, k_p = jax.random.split(key)
    x = jax.random.normal(k_x, (batch, seq, input_dim), dtype=jnp.float32)
    params = init_params(k_p, input_dim, hidden_dim)

    ref = reference_forward(x, params)

    # f32 path (bit-exact vs. the reference).
    out = jax.block_until_ready(audio_video_feature_extractor(x, params))
    assert out.shape == (batch, seq, hidden_dim), out.shape
    assert jnp.allclose(out, ref, atol=1e-4, rtol=1e-4), (
        float(jnp.max(jnp.abs(out - ref))))

    # bf16 production path: weights pre-cast once, x cast in-kernel, f32
    # accumulation + f32 bias/ReLU, relaxed tolerance for the bf16 quantization
    # (which compounds over the three matmuls — intentional).
    bf16_params = cast_params(params, jnp.bfloat16)
    out_bf16 = jax.block_until_ready(
        audio_video_feature_extractor(x, bf16_params, compute_dtype=jnp.bfloat16))
    assert out_bf16.shape == (batch, seq, hidden_dim), out_bf16.shape
    assert jnp.allclose(out_bf16, ref, atol=1e-1, rtol=1e-1), (
        float(jnp.max(jnp.abs(out_bf16 - ref))))

    print("KERNEL_OK")
</pallas_src>

<mosaic_0001>
module attributes {stable_mosaic.version = 11 : i64} {
  func.func @_mlp_kernel(%arg0: i32, %arg1: memref<8x32xf32, #tpu.memory_space<vmem>>, %arg2: memref<32x32xf32, #tpu.memory_space<vmem>>, %arg3: memref<3x32xf32, #tpu.memory_space<vmem>>, %arg4: memref<32x32xf32, #tpu.memory_space<vmem>>, %arg5: memref<32x32xf32, #tpu.memory_space<vmem>>, %arg6: memref<8x32xf32, #tpu.memory_space<vmem>>) attributes {dimension_semantics = [#tpu.dimension_semantics<parallel>], iteration_bounds = array<i64: 2>, scalar_prefetch = 0 : i64, scratch_operands = 0 : i64, tpu.core_type = #tpu.core_type<tc>, window_params = [{transform_indices = @transform_0, window_bounds = array<i64: 8, 32>}, {pipeline_mode = #tpu.pipeline_mode<synchronous>, transform_indices = @transform_1, window_bounds = array<i64: 32, 32>}, {pipeline_mode = #tpu.pipeline_mode<synchronous>, transform_indices = @transform_2, window_bounds = array<i64: 3, 32>}, {pipeline_mode = #tpu.pipeline_mode<synchronous>, transform_indices = @transform_3, window_bounds = array<i64: 32, 32>}, {pipeline_mode = #tpu.pipeline_mode<synchronous>, transform_indices = @transform_4, window_bounds = array<i64: 32, 32>}, {transform_indices = @transform_5, window_bounds = array<i64: 8, 32>}]} {
    %c0 = arith.constant 0 : index
    %c0_0 = arith.constant 0 : index
    %0 = vector.load %arg1[%c0, %c0_0] : memref<8x32xf32, #tpu.memory_space<vmem>>, vector<8x32xf32>
    %c0_1 = arith.constant 0 : index
    %c0_2 = arith.constant 0 : index
    %1 = vector.load %arg2[%c0_1, %c0_2] : memref<32x32xf32, #tpu.memory_space<vmem>>, vector<32x32xf32>
    %cst = arith.constant dense<0.000000e+00> : vector<8x32xf32>
    %2 = tpu.matmul %0, %1, %cst {dimension_numbers = #tpu.dot_dimension_numbers<[1], [0], [0], [1], [0, 0, 1, 1], [], []>} : vector<8x32xf32>, vector<32x32xf32>, vector<8x32xf32> -> vector<8x32xf32>
    %c0_3 = arith.constant 0 : index
    %c0_4 = arith.constant 0 : index
    %3 = vector.load %arg3[%c0_3, %c0_4] : memref<3x32xf32, #tpu.memory_space<vmem>>, vector<1x32xf32>
    %4 = vector.broadcast %3 : vector<1x32xf32> to vector<8x32xf32>
    %5 = arith.addf %2, %4 : vector<8x32xf32>
    %cst_5 = arith.constant 0.000000e+00 : f32
    %6 = vector.broadcast %cst_5 : f32 to vector<8x32xf32>
    %7 = arith.maximumf %5, %6 : vector<8x32xf32>
    %c0_6 = arith.constant 0 : index
    %c0_7 = arith.constant 0 : index
    %8 = vector.load %arg4[%c0_6, %c0_7] : memref<32x32xf32, #tpu.memory_space<vmem>>, vector<32x32xf32>
    %cst_8 = arith.constant dense<0.000000e+00> : vector<8x32xf32>
    %9 = tpu.matmul %7, %8, %cst_8 {dimension_numbers = #tpu.dot_dimension_numbers<[1], [0], [0], [1], [0, 0, 1, 1], [], []>} : vector<8x32xf32>, vector<32x32xf32>, vector<8x32xf32> -> vector<8x32xf32>
    %c1 = arith.constant 1 : index
    %c0_9 = arith.constant 0 : index
    %10 = vector.load %arg3[%c1, %c0_9] : memref<3x32xf32, #tpu.memory_space<vmem>>, vector<1x32xf32>
    %11 = vector.broadcast %10 : vector<1x32xf32> to vector<8x32xf32>
    %12 = arith.addf %9, %11 : vector<8x32xf32>
    %cst_10 = arith.constant 0.000000e+00 : f32
    %13 = vector.broadcast %cst_10 : f32 to vector<8x32xf32>
    %14 = arith.maximumf %12, %13 : vector<8x32xf32>
    %c0_11 = arith.constant 0 : index
    %c0_12 = arith.constant 0 : index
    %15 = vector.load %arg5[%c0_11, %c0_12] : memref<32x32xf32, #tpu.memory_space<vmem>>, vector<32x32xf32>
    %cst_13 = arith.constant dense<0.000000e+00> : vector<8x32xf32>
    %16 = tpu.matmul %14, %15, %cst_13 {dimension_numbers = #tpu.dot_dimension_numbers<[1], [0], [0], [1], [0, 0, 1, 1], [], []>} : vector<8x32xf32>, vector<32x32xf32>, vector<8x32xf32> -> vector<8x32xf32>
    %c2 = arith.constant 2 : index
    %c0_14 = arith.constant 0 : index
    %17 = vector.load %arg3[%c2, %c0_14] : memref<3x32xf32, #tpu.memory_space<vmem>>, vector<1x32xf32>
    %18 = vector.broadcast %17 : vector<1x32xf32> to vector<8x32xf32>
    %19 = arith.addf %16, %18 : vector<8x32xf32>
    %c0_15 = arith.constant 0 : index
    %c0_16 = arith.constant 0 : index
    %20 = vector.load %arg6[%c0_15, %c0_16] : memref<8x32xf32, #tpu.memory_space<vmem>>, vector<8x32xf32>
    tpu.vector_store %arg6[%c0_15, %c0_16], %19 {strides = array<i32>} : memref<8x32xf32, #tpu.memory_space<vmem>>, vector<8x32xf32>,
    return
  }
  func.func @transform_0(%arg0: i32) -> (i32, i32) {
    %c0_i32 = arith.constant 0 : i32
    %c0_i32_0 = arith.constant 0 : i32
    return %arg0, %c0_i32 : i32, i32
  }
  func.func @transform_1(%arg0: i32) -> (i32, i32) {
    %c0_i32 = arith.constant 0 : i32
    %c0_i32_0 = arith.constant 0 : i32
    %c0_i32_1 = arith.constant 0 : i32
    return %c0_i32, %c0_i32_0 : i32, i32
  }
  func.func @transform_2(%arg0: i32) -> (i32, i32) {
    %c0_i32 = arith.constant 0 : i32
    %c0_i32_0 = arith.constant 0 : i32
    %c0_i32_1 = arith.constant 0 : i32
    return %c0_i32, %c0_i32_0 : i32, i32
  }
  func.func @transform_3(%arg0: i32) -> (i32, i32) {
    %c0_i32 = arith.constant 0 : i32
    %c0_i32_0 = arith.constant 0 : i32
    %c0_i32_1 = arith.constant 0 : i32
    return %c0_i32, %c0_i32_0 : i32, i32
  }
  func.func @transform_4(%arg0: i32) -> (i32, i32) {
    %c0_i32 = arith.constant 0 : i32
    %c0_i32_0 = arith.constant 0 : i32
    %c0_i32_1 = arith.constant 0 : i32
    return %c0_i32, %c0_i32_0 : i32, i32
  }
  func.func @transform_5(%arg0: i32) -> (i32, i32) {
    %c0_i32 = arith.constant 0 : i32
    %c0_i32_0 = arith.constant 0 : i32
    return %arg0, %c0_i32 : i32, i32
  }
}

</mosaic_0001>

<llo_original>
// kernel: audio_video_feature_extractor.1
$region0: #{audio_video_feature_extractor.1}
  #allocation0 [shape = 'u32[]', space=smem, size = 0x4, offset = 0x4, fixed_abs, tag = 'smem constant byte address 0x4 - core index']
  #allocation1 [shape = 'u32[72,128]{1,0:T(1,128)}', space=vmem, size = 0x9000, scoped, tag = 'internal scratch']
  %s0 = inlined_call_operand.hbm [shape: f32[16,32], index: 0, kind: input, shape index: {}]
  %s1 = inlined_call_operand.hbm [shape: f32[32,32], index: 1, kind: input, shape index: {}]
  %s2 = inlined_call_operand.vmem [shape: f32[3,32], index: 2, kind: input, shape index: {}]
  %s3 = inlined_call_operand.hbm [shape: f32[32,32], index: 3, kind: input, shape index: {}]
  %s4 = inlined_call_operand.hbm [shape: f32[32,32], index: 4, kind: input, shape index: {}]
  %s5 = inlined_call_operand.hbm [shape: f32[16,32], index: 5, kind: output, shape index: {}]
  %s6 = sld [smem:[#allocation0]]
  $region69: #{audio_video_feature_extractor.1} parent=0
    _
  %s8 = ssub.s32 1, %s6
  %s9 = scalar_select 0, %s8, %s6
  $region1: #{audio_video_feature_extractor.1} parent=0
    #allocation2 [shape = 'u8[8192]{0}', space=vmem, size = 0x2000, scoped, tag = 'input window, operand 0']
    #allocation3 [shape = 's32[2]{0}', space=sflag, size = 0x8, scoped, tag = 'scoped memory for audio_video_feature_extractor.1']
    #allocation4 [shape = 's32[2]{0}', space=sflag, size = 0x8, scoped, tag = 'scoped memory for audio_video_feature_extractor.1']
    #allocation5 [shape = 'u8[16384]{0}', space=vmem, size = 0x4000, scoped, tag = 'input window, operand 1, single buffered']
    #allocation6 [shape = 's32[1]{0}', space=sflag, size = 0x4, scoped, tag = 'scoped memory for audio_video_feature_extractor.1']
    #allocation7 [shape = 'u8[16384]{0}', space=vmem, size = 0x4000, scoped, tag = 'input window, operand 3, single buffered']
    #allocation8 [shape = 'u8[16384]{0}', space=vmem, size = 0x4000, scoped, tag = 'input window, operand 4, single buffered']
    #allocation9 [shape = 's32[1]{0}', space=sflag, size = 0x4, scoped, tag = 'scoped memory for audio_video_feature_extractor.1']
    #allocation10 [shape = 'u8[8192]{0}', space=vmem, size = 0x2000, scoped, tag = 'output window, operand 0']
    %10 = vsyncpa [#allocation3], 0
    %s11 = scalar_lea.sflag [#allocation3], 1
    %12 = vsyncpa %s11, 0
    %13 = vsyncpa [#allocation6], 0
    %14 = vsyncpa [#allocation9], 0
    %15 = vsyncpa [#allocation4], 0
    %s16 = scalar_lea.sflag [#allocation4], 1
    %17 = vsyncpa %s16, 0
    loop: start=0, step=1, limit=4
    $region2: #{audio_video_feature_extractor.1} parent=1 // loop_pre_header
      _
    $region3: #{audio_video_feature_extractor.1} parent=1 // loop_header
      %s19 = sphi 0, %s23
      %p20 = scmp.ge.s32.totalorder %s19, 4
      %s29 = sphi 0, %s31
      %s32 = sphi 0, %s29
      %s33 = sphi 0, %s32
      %s49 = sphi 0, %s33
      %s53 = sphi 0, %s53
      %s55 = sphi 0, %s53
      %s56 = sphi 0, %s55
      %s70 = sphi 0, %s56
      %s74 = sphi 0, %s74
      %s76 = sphi 0, %s74
      %s77 = sphi 0, %s76
      %s91 = sphi 0, %s77
      %s95 = sphi 0, %s95
      %s97 = sphi 0, %s95
      %s98 = sphi 0, %s97
      %s112 = sphi 0, %s98
      %s116 = sphi 0, %s116
      %s118 = sphi 0, %s116
      %s119 = sphi 0, %s118
      %s133 = sphi 0, %s119
      %s139 = sphi 0, %s141
      %s142 = sphi 0, %s139
      %s143 = sphi 0, %s142
      %s159 = sphi 0, %s143
    $region4: #{audio_video_feature_extractor.1} parent=1 // loop_header_branch
      %22 = sbr.rel (%p20) target = $region8
    $region5: #{audio_video_feature_extractor.1} parent=1 // loop_body
      %s24 = ssub.s32 %s19, 1
      %s25 = ssub.s32 %s19, 2
      %s26 = sadd.s32 %s19, 1
      %s27 = ssub.s32 %s19, %s26
      %p28 = scmp.eq.s32.totalorder %s27, 0
      %s30 = sadd.s32 %s29, 1
      %s31 = scalar_select %p28, %s29, %s30
      %p34 = pneg %p28
      %p35 = scmp.eq.s32.totalorder %s19, 1
      %p36 = por %p34, %p35
      %p37 = scmp.ne.s32.totalorder %s29, %s32
      %p38 = scmp.eq.s32.totalorder %s19, 0
      %p39 = por %p37, %p38
      %p40 = scmp.ne.s32.totalorder %s29, %s32
      %p41 = scmp.eq.s32.totalorder %s24, 1
      %p42 = por %p40, %p41
      %p43 = scmp.ne.s32.totalorder %s32, %s33
      %p44 = scmp.eq.s32.totalorder %s24, 0
      %p45 = por %p43, %p44
      %p46 = scmp.ne.s32.totalorder %s32, %s33
      %p47 = scmp.eq.s32.totalorder %s25, 1
      %p48 = por %p46, %p47
      %p50 = scmp.ne.s32.totalorder %s33, %s49
      %p51 = scmp.eq.s32.totalorder %s25, 0
      %p52 = por %p50, %p51
      %s54 = sadd.s32 %s53, 1
      %p57 = scmp.eq.s32.totalorder %s19, 1
      %p58 = scmp.ne.s32.totalorder %s53, %s55
      %p59 = scmp.eq.s32.totalorder %s19, 0
      %p60 = por %p58, %p59
      %p61 = scmp.ne.s32.totalorder %s53, %s55
      %p62 = scmp.eq.s32.totalorder %s24, 1
      %p63 = por %p61, %p62
      %p64 = scmp.ne.s32.totalorder %s55, %s56
      %p65 = scmp.eq.s32.totalorder %s24, 0
      %p66 = por %p64, %p65
      %p67 = scmp.ne.s32.totalorder %s55, %s56
      %p68 = scmp.eq.s32.totalorder %s25, 1
      %p69 = por %p67, %p68
      %p71 = scmp.ne.s32.totalorder %s56, %s70
      %p72 = scmp.eq.s32.totalorder %s25, 0
      %p73 = por %p71, %p72
      %s75 = sadd.s32 %s74, 1
      %p78 = scmp.eq.s32.totalorder %s19, 1
      %p79 = scmp.ne.s32.totalorder %s74, %s76
      %p80 = scmp.eq.s32.totalorder %s19, 0
      %p81 = por %p79, %p80
      %p82 = scmp.ne.s32.totalorder %s74, %s76
      %p83 = scmp.eq.s32.totalorder %s24, 1
      %p84 = por %p82, %p83
      %p85 = scmp.ne.s32.totalorder %s76, %s77
      %p86 = scmp.eq.s32.totalorder %s24, 0
      %p87 = por %p85, %p86
      %p88 = scmp.ne.s32.totalorder %s76, %s77
      %p89 = scmp.eq.s32.totalorder %s25, 1
      %p90 = por %p88, %p89
      %p92 = scmp.ne.s32.totalorder %s77, %s91
      %p93 = scmp.eq.s32.totalorder %s25, 0
      %p94 = por %p92, %p93
      %s96 = sadd.s32 %s95, 1
      %p99 = scmp.eq.s32.totalorder %s19, 1
      %p100 = scmp.ne.s32.totalorder %s95, %s97
      %p101 = scmp.eq.s32.totalorder %s19, 0
      %p102 = por %p100, %p101
      %p103 = scmp.ne.s32.totalorder %s95, %s97
      %p104 = scmp.eq.s32.totalorder %s24, 1
      %p105 = por %p103, %p104
      %p106 = scmp.ne.s32.totalorder %s97, %s98
      %p107 = scmp.eq.s32.totalorder %s24, 0
      %p108 = por %p106, %p107
      %p109 = scmp.ne.s32.totalorder %s97, %s98
      %p110 = scmp.eq.s32.totalorder %s25, 1
      %p111 = por %p109, %p110
      %p113 = scmp.ne.s32.totalorder %s98, %s112
      %p114 = scmp.eq.s32.totalorder %s25, 0
      %p115 = por %p113, %p114
      %s117 = sadd.s32 %s116, 1
      %p120 = scmp.eq.s32.totalorder %s19, 1
      %p121 = scmp.ne.s32.totalorder %s116, %s118
      %p122 = scmp.eq.s32.totalorder %s19, 0
      %p123 = por %p121, %p122
      %p124 = scmp.ne.s32.totalorder %s116, %s118
      %p125 = scmp.eq.s32.totalorder %s24, 1
      %p126 = por %p124, %p125
      %p127 = scmp.ne.s32.totalorder %s118, %s119
      %p128 = scmp.eq.s32.totalorder %s24, 0
      %p129 = por %p127, %p128
      %p130 = scmp.ne.s32.totalorder %s118, %s119
      %p131 = scmp.eq.s32.totalorder %s25, 1
      %p132 = por %p130, %p131
      %p134 = scmp.ne.s32.totalorder %s119, %s133
      %p135 = scmp.eq.s32.totalorder %s25, 0
      %p136 = por %p134, %p135
      %s137 = ssub.s32 %s19, %s26
      %p138 = scmp.eq.s32.totalorder %s137, 0
      %s140 = sadd.s32 %s139, 1
      %s141 = scalar_select %p138, %s139, %s140
      %p144 = pneg %p138
      %p145 = scmp.eq.s32.totalorder %s19, 1
      %p146 = por %p144, %p145
      %p147 = scmp.ne.s32.totalorder %s139, %s142
      %p148 = scmp.eq.s32.totalorder %s19, 0
      %p149 = por %p147, %p148
      %p150 = scmp.ne.s32.totalorder %s139, %s142
      %p151 = scmp.eq.s32.totalorder %s24, 1
      %p152 = por %p150, %p151
      %p153 = scmp.ne.s32.totalorder %s142, %s143
      %p154 = scmp.eq.s32.totalorder %s24, 0
      %p155 = por %p153, %p154
      %p156 = scmp.ne.s32.totalorder %s142, %s143
      %p157 = scmp.eq.s32.totalorder %s25, 1
      %p158 = por %p156, %p157
      %p160 = scmp.ne.s32.totalorder %s143, %s159
      %p161 = scmp.eq.s32.totalorder %s25, 0
      %p162 = por %p160, %p161
      %p163 = scmp.le.s32.totalorder 1, %s19
      %p164 = scmp.lt.s32.totalorder %s19, 3
      %p165 = pnand %p163, %p164
      %p166 = pneg %p165
      // Predicated region
      $region9: #{audio_video_feature_extractor.1} parent=5 // pred_check
        _
      $region10: #{audio_video_feature_extractor.1} parent=5 // pred_check_branch
        %168 = sbr.rel (%p165) target = $region12
      $region11: #{audio_video_feature_extractor.1} parent=5 // pred_region
        %s169 = ssub.s32 %s19, 1
        // Predicated region
        $region13: #{audio_video_feature_extractor.1} parent=11 // pred_check
          %p170 = pneg %p66
        $region14: #{audio_video_feature_extractor.1} parent=11 // pred_check_branch
          %172 = sbr.rel (%p170) target = $region16
        $region15: #{audio_video_feature_extractor.1} parent=11 // pred_region
          %174 = vsyncadd [#allocation6], 0
          %s175 = sshll.u32 %s1, 4
          %s176 = int_to_ptr.hbm [resolvable:$true] %s175
          %s177 = sshll.u32 [#allocation5], 4
          %s178 = int_to_ptr.vmem [resolvable:$true] %s177
          %183 = dma.hbm_to_vmem [thread:$0]  %s176, 512, %s178, [#allocation6], 128, 128, 8
        $region16: #{audio_video_feature_extractor.1} parent=11 // pred_fallthru
          _
        // Predicated region
        $region17: #{audio_video_feature_extractor.1} parent=11 // pred_check
          %p184 = pneg %p87
        $region18: #{audio_video_feature_extractor.1} parent=11 // pred_check_branch
          %186 = sbr.rel (%p184) target = $region20
        $region19: #{audio_video_feature_extractor.1} parent=11 // pred_region
          _
        $region20: #{audio_video_feature_extractor.1} parent=11 // pred_fallthru
          _
        // Predicated region
        $region21: #{audio_video_feature_extractor.1} parent=11 // pred_check
          %p187 = pneg %p108
        $region22: #{audio_video_feature_extractor.1} parent=11 // pred_check_branch
          %189 = sbr.rel (%p187) target = $region24
        $region23: #{audio_video_feature_extractor.1} parent=11 // pred_region
          %191 = vsyncadd [#allocation6], 0
          %s192 = sshll.u32 %s3, 4
          %s193 = int_to_ptr.hbm [resolvable:$true] %s192
          %s194 = sshll.u32 [#allocation7], 4
          %s195 = int_to_ptr.vmem [resolvable:$true] %s194
          %200 = dma.hbm_to_vmem [thread:$0]  %s193, 512, %s195, [#allocation6], 128, 128, 8
        $region24: #{audio_video_feature_extractor.1} parent=11 // pred_fallthru
          _
        // Predicated region
        $region25: #{audio_video_feature_extractor.1} parent=11 // pred_check
          %p201 = pneg %p129
        $region26: #{audio_video_feature_extractor.1} parent=11 // pred_check_branch
          %203 = sbr.rel (%p201) target = $region28
        $region27: #{audio_video_feature_extractor.1} parent=11 // pred_region
          %205 = vsyncadd [#allocation9], 0
          %s206 = sshll.u32 %s4, 4
          %s207 = int_to_ptr.hbm [resolvable:$true] %s206
          %s208 = sshll.u32 [#allocation8], 4
          %s209 = int_to_ptr.vmem [resolvable:$true] %s208
          %214 = dma.hbm_to_vmem [thread:$0]  %s207, 512, %s209, [#allocation9], 128, 128, 8
        $region28: #{audio_video_feature_extractor.1} parent=11 // pred_fallthru
          _
      $region12: #{audio_video_feature_extractor.1} parent=5 // pred_fallthru
        _
      %p215 = scmp.lt.s32.totalorder %s19, 2
      // Predicated region
      $region29: #{audio_video_feature_extractor.1} parent=5 // pred_check
        %p216 = pneg %p215
      $region30: #{audio_video_feature_extractor.1} parent=5 // pred_check_branch
        %218 = sbr.rel (%p216) target = $region32
      $region31: #{audio_video_feature_extractor.1} parent=5 // pred_region
        // Predicated region
        $region33: #{audio_video_feature_extractor.1} parent=31 // pred_check
          %p219 = pneg %p39
        $region34: #{audio_video_feature_extractor.1} parent=31 // pred_check_branch
          %221 = sbr.rel (%p219) target = $region36
        $region35: #{audio_video_feature_extractor.1} parent=31 // pred_region
          %s222 = sand.u32 %s29, 1
          %s223 = scalar_lea.sflag [#allocation3], %s222
          %s224 = sand.u32 %s29, 1
          %s225 = smul.addr %s224, 8
          %s226 = scalar_lea.vmem [#allocation2], %s225
          %228 = vsyncadd %s223, 0
          %s229 = smul.addr %s19, 8
          %s230 = scalar_lea.hbm %s0, %s229
          %s232 = sshll.u32 %s230, 4
          %s233 = int_to_ptr.hbm [resolvable:$true] %s232
          %s234 = sshll.u32 %s226, 4
          %s235 = int_to_ptr.vmem [resolvable:$true] %s234
          %237 = dma.hbm_to_vmem [thread:$0]  %s233, 128, %s235, %s223
        $region36: #{audio_video_feature_extractor.1} parent=31 // pred_fallthru
          _
      $region32: #{audio_video_feature_extractor.1} parent=5 // pred_fallthru
        _
      %p238 = scmp.le.s32.totalorder 1, %s19
      %p239 = scmp.lt.s32.totalorder %s19, 3
      %p240 = pnand %p238, %p239
      %p241 = pneg %p240
      // Predicated region
      $region37: #{audio_video_feature_extractor.1} parent=5 // pred_check
        _
      $region38: #{audio_video_feature_extractor.1} parent=5 // pred_check_branch
        %243 = sbr.rel (%p240) target = $region40
      $region39: #{audio_video_feature_extractor.1} parent=5 // pred_region
        %s244 = ssub.s32 %s19, 1
        %s245 = sand.u32 %s32, 1
        %s246 = scalar_lea.sflag [#allocation3], %s245
        %s247 = sand.u32 %s32, 1
        %s248 = smul.addr %s247, 8
        %s249 = scalar_lea.vmem [#allocation2], %s248
        // Predicated region
        $region41: #{audio_video_feature_extractor.1} parent=39 // pred_check
          %p250 = pneg %p45
        $region42: #{audio_video_feature_extractor.1} parent=39 // pred_check_branch
          %252 = sbr.rel (%p250) target = $region44
        $region43: #{audio_video_feature_extractor.1} parent=39 // pred_region
          %254 = dma.done %s246, 128
        $region44: #{audio_video_feature_extractor.1} parent=39 // pred_fallthru
          _
        // Predicated region
        $region45: #{audio_video_feature_extractor.1} parent=39 // pred_check
          %p255 = pneg %p66
        $region46: #{audio_video_feature_extractor.1} parent=39 // pred_check_branch
          %257 = sbr.rel (%p255) target = $region48
        $region47: #{audio_video_feature_extractor.1} parent=39 // pred_region
          %259 = dma.done [#allocation6], 512
        $region48: #{audio_video_feature_extractor.1} parent=39 // pred_fallthru
          _
        // Predicated region
        $region49: #{audio_video_feature_extractor.1} parent=39 // pred_check
          %p260 = pneg %p108
        $region50: #{audio_video_feature_extractor.1} parent=39 // pred_check_branch
          %262 = sbr.rel (%p260) target = $region52
        $region51: #{audio_video_feature_extractor.1} parent=39 // pred_region
          %264 = dma.done [#allocation6], 512
        $region52: #{audio_video_feature_extractor.1} parent=39 // pred_fallthru
          _
        // Predicated region
        $region53: #{audio_video_feature_extractor.1} parent=39 // pred_check
          %p265 = pneg %p129
        $region54: #{audio_video_feature_extractor.1} parent=39 // pred_check_branch
          %267 = sbr.rel (%p265) target = $region56
        $region55: #{audio_video_feature_extractor.1} parent=39 // pred_region
          %269 = dma.done [#allocation9], 512
        $region56: #{audio_video_feature_extractor.1} parent=39 // pred_fallthru
          _
        %s270 = sand.u32 %s32, 1
        %s271 = scalar_lea.sflag [#allocation3], %s270
        %s272 = sand.u32 %s32, 1
        %s273 = smul.addr %s272, 8
        %s274 = scalar_lea.vmem [#allocation2], %s273
        %p275 = pneg %p45
        %p276 = pneg %p42
        %p277 = pneg %p66
        %p278 = pneg %p63
        %p279 = pneg %p87
        %p280 = pneg %p84
        %p281 = pneg %p108
        %p282 = pneg %p105
        %p283 = pneg %p129
        %p284 = pneg %p126
        %p285 = pneg %p155
        %p286 = pneg %p152
        %s287 = sand.u32 %s142, 1
        %s288 = scalar_lea.sflag [#allocation4], %s287
        %s289 = sand.u32 %s142, 1
        %s290 = smul.addr %s289, 8
        %s291 = scalar_lea.vmem [#allocation10], %s290
        %v292 = vld [vmem:[%s249] sm:$0xff]
        %v293 = vld [vmem:[#allocation5] sm:$0xff]
        %v294 = vld [vmem:[#allocation5 + $0x8] sm:$0xff]
        %v295 = vld [vmem:[#allocation5 + $0x10] sm:$0xff]
        %v296 = vld [vmem:[#allocation5 + $0x18] sm:$0xff]
        %v297 = vld [vmem:[%s2] sm:$0x1]
        %v298 = vperm.slane %v297, 0
        %vm299 = vcmask 261120
        %v301 = vsel %vm299, %v292, 0
        %303 = vmatpush.msra.mxu0 0.0
        %304 = vmatpush.msra.mxu0 0.0
        %305 = vmatpush.msra.mxu0 0.0
        %306 = vmatpush.msra.mxu0 0.0
        %307 = vmatpush.msra.mxu0 0.0
        %308 = vmatpush.msra.mxu0 0.0
        %309 = vmatpush.msra.mxu0 0.0
        %310 = vmatpush.msra.mxu0 0.0
        %311 = vmatpush.msra.mxu0 0.0
        %312 = vmatpush.msra.mxu0 0.0
        %313 = vmatpush.msra.mxu0 0.0
        %314 = vmatpush.msra.mxu0 0.0
        %315 = vmatpush.msra.mxu0 %v296
        %316 = vmatpush.msra.mxu0 %v295
        %317 = vmatpush.msra.mxu0 %v294
        %318 = vmatpush.msra.mxu0 %v293
        %319 = vmatmul.f32.gmra.mxu0 %v301
        %v320 = vpop.f32.mrf.mxu0
        %v321 = vadd.f32 %v298, %v320
        %322 = vdwg.mxu0
        %v323 = vmax.f32 %v321, 0.0
        %v324 = vld [vmem:[#allocation7] sm:$0xff]
        %v325 = vld [vmem:[#allocation7 + $0x8] sm:$0xff]
        %v326 = vld [vmem:[#allocation7 + $0x10] sm:$0xff]
        %v327 = vld [vmem:[#allocation7 + $0x18] sm:$0xff]
        %v328 = vld [vmem:[%s2 + $0x1] sm:$0x1]
        %v329 = vperm.slane %v328, 0
        %v331 = vsel %vm299, %v323, 0
        %333 = vmatpush.msra.mxu0 0.0
        %334 = vmatpush.msra.mxu0 0.0
        %335 = vmatpush.msra.mxu0 0.0
        %336 = vmatpush.msra.mxu0 0.0
        %337 = vmatpush.msra.mxu0 0.0
        %338 = vmatpush.msra.mxu0 0.0
        %339 = vmatpush.msra.mxu0 0.0
        %340 = vmatpush.msra.mxu0 0.0
        %341 = vmatpush.msra.mxu0 0.0
        %342 = vmatpush.msra.mxu0 0.0
        %343 = vmatpush.msra.mxu0 0.0
        %344 = vmatpush.msra.mxu0 0.0
        %345 = vmatpush.msra.mxu0 %v327
        %346 = vmatpush.msra.mxu0 %v326
        %347 = vmatpush.msra.mxu0 %v325
        %348 = vmatpush.msra.mxu0 %v324
        %349 = vmatmul.f32.gmra.mxu0 %v331
        %v350 = vpop.f32.mrf.mxu0
        %v351 = vadd.f32 %v329, %v350
        %352 = vdwg.mxu0
        %v353 = vmax.f32 %v351, 0.0
        %v354 = vld [vmem:[#allocation8] sm:$0xff]
        %v355 = vld [vmem:[#allocation8 + $0x8] sm:$0xff]
        %v356 = vld [vmem:[#allocation8 + $0x10] sm:$0xff]
        %v357 = vld [vmem:[#allocation8 + $0x18] sm:$0xff]
        %v358 = vld [vmem:[%s2 + $0x2] sm:$0x1]
        %v359 = vperm.slane %v358, 0
        %v361 = vsel %vm299, %v353, 0
        %363 = vmatpush.msra.mxu0 0.0
        %364 = vmatpush.msra.mxu0 0.0
        %365 = vmatpush.msra.mxu0 0.0
        %366 = vmatpush.msra.mxu0 0.0
        %367 = vmatpush.msra.mxu0 0.0
        %368 = vmatpush.msra.mxu0 0.0
        %369 = vmatpush.msra.mxu0 0.0
        %370 = vmatpush.msra.mxu0 0.0
        %371 = vmatpush.msra.mxu0 0.0
        %372 = vmatpush.msra.mxu0 0.0
        %373 = vmatpush.msra.mxu0 0.0
        %374 = vmatpush.msra.mxu0 0.0
        %375 = vmatpush.msra.mxu0 %v357
        %376 = vmatpush.msra.mxu0 %v356
        %377 = vmatpush.msra.mxu0 %v355
        %378 = vmatpush.msra.mxu0 %v354
        %379 = vmatmul.f32.gmra.mxu0 %v361
        %v380 = vpop.f32.mrf.mxu0
        %v381 = vadd.f32 %v359, %v380
        %382 = vdwg.mxu0
        %383 = vst.msk [vmem:[%s291] sm:$0xff] %vm299, %v381
        %s384 = sand.u32 %s142, 1
        %s385 = scalar_lea.sflag [#allocation4], %s384
        %s386 = sand.u32 %s142, 1
        %s387 = smul.addr %s386, 8
        %s388 = scalar_lea.vmem [#allocation10], %s387
        // Predicated region
        $region57: #{audio_video_feature_extractor.1} parent=39 // pred_check
          %p389 = pneg %p152
        $region58: #{audio_video_feature_extractor.1} parent=39 // pred_check_branch
          %391 = sbr.rel (%p389) target = $region60
        $region59: #{audio_video_feature_extractor.1} parent=39 // pred_region
          %393 = vsyncadd %s385, 0
          %s394 = smul.addr %s24, 8
          %s395 = scalar_lea.hbm %s5, %s394
          %s397 = sshll.u32 %s388, 4
          %s398 = int_to_ptr.vmem [resolvable:$true] %s397
          %s399 = sshll.u32 %s395, 4
          %s400 = int_to_ptr.hbm [resolvable:$true] %s399
          %402 = dma.vmem_to_hbm [thread:$0]  %s398, 128, %s400, %s385
        $region60: #{audio_video_feature_extractor.1} parent=39 // pred_fallthru
          _
      $region40: #{audio_video_feature_extractor.1} parent=5 // pred_fallthru
        _
      %p403 = scmp.le.s32.totalorder 2, %s19
      // Predicated region
      $region61: #{audio_video_feature_extractor.1} parent=5 // pred_check
        %p404 = pneg %p403
      $region62: #{audio_video_feature_extractor.1} parent=5 // pred_check_branch
        %406 = sbr.rel (%p404) target = $region64
      $region63: #{audio_video_feature_extractor.1} parent=5 // pred_region
        %s407 = ssub.s32 %s19, 2
        // Predicated region
        $region65: #{audio_video_feature_extractor.1} parent=63 // pred_check
          %p408 = pneg %p158
        $region66: #{audio_video_feature_extractor.1} parent=63 // pred_check_branch
          %410 = sbr.rel (%p408) target = $region68
        $region67: #{audio_video_feature_extractor.1} parent=63 // pred_region
          %s411 = sand.u32 %s143, 1
          %s412 = scalar_lea.sflag [#allocation4], %s411
          %s413 = sand.u32 %s143, 1
          %s414 = smul.addr %s413, 8
          %s415 = scalar_lea.vmem [#allocation10], %s414
          %417 = dma.done %s412, 128
        $region68: #{audio_video_feature_extractor.1} parent=63 // pred_fallthru
          _
      $region64: #{audio_video_feature_extractor.1} parent=5 // pred_fallthru
        _
    $region6: #{audio_video_feature_extractor.1} parent=1 // loop_footer
      %s23 = sadd.s32 1, %s19
    $region7: #{audio_video_feature_extractor.1} parent=1 // loop_footer_branch
      %18 = sbr.rel target = $region3
    $region8: #{audio_video_feature_extractor.1} parent=1 // loop_exit
      _
    %418 = vsyncpa [#allocation3], 1
    %s419 = scalar_lea.sflag [#allocation3], 1
    %420 = vsyncpa %s419, 1
    %421 = vsyncpa [#allocation6], 1
    %422 = vsyncpa [#allocation9], 1
    %423 = vsyncpa [#allocation4], 1
    %s424 = scalar_lea.sflag [#allocation4], 1
    %425 = vsyncpa %s424, 1

</llo_original>
